<compile_context>
chip_gen: v7x
topology: tpu7x:2x2x1
jax: 0.10.0
libtpu: 0.0.40
codegen_flags: <defaults>
</compile_context>

<pallas_src>
import math

import jax
import jax.numpy as jnp
from jax.experimental import pallas as pl
from jax.experimental.pallas import tpu as pltpu


def _hinge_kernel(out_ref, tgt_ref, loss_ref):
    # Elementwise hinge on one (TM, TN) tile: VPU-only (mul, sub, max).
    prod = out_ref[...] * tgt_ref[...]
    loss_ref[...] = jnp.maximum(1.0 - prod, 0.0).astype(loss_ref.dtype)


_PER_ARRAY_BLOCK_BYTES = 2 * 1024 * 1024  # ~2 MiB/array/block -> 12 MiB double-buffered
_MIN_ARRAY_BLOCK_BYTES = 512 * 1024       # measured ~85%-of-roofline block floor
_MIN_GRID_STEPS = 8                       # a few steps per TC on v7x megacore


def _sublane_multiple(dtype):
    # f32 -> 8, bf16 -> 16, int8/fp8 -> 32 (sub-32-bit dtypes pack along sublanes).
    return max(8, 32 // jnp.dtype(dtype).itemsize)


def _round_up(x, m):
    return -(-x // m) * m


def _round_down(x, m):
    return (x // m) * m


def _pick_tiles(rows, cols, dtype):
    itemsize = jnp.dtype(dtype).itemsize
    sub = _sublane_multiple(dtype)

    # Lane tiling only if even one sublane-group of rows blows the block budget
    # (only reachable via the odd-shape fallback path with huge aligned cols).
    if cols % 128 == 0 and cols * itemsize * sub > _PER_ARRAY_BLOCK_BYTES:
        tn = max(128, _round_down(_PER_ARRAY_BLOCK_BYTES // (sub * itemsize), 128))
        tn = min(tn, cols)
    else:
        tn = cols

    per_row_bytes = max(1, tn * itemsize)
    # Fill the ~2 MiB/array block budget...
    tm = max(sub, _round_down(_PER_ARRAY_BLOCK_BYTES // per_row_bytes, sub))
    # ...but keep >= _MIN_GRID_STEPS row steps when rows allow it (DMA overlap on
    # v7x megacore), never shrinking a block below ~512 KiB/array.
    cap = _round_up(max(1, -(-rows // _MIN_GRID_STEPS)), sub)
    if cap < tm:
        floor = max(sub, _round_down(_MIN_ARRAY_BLOCK_BYTES // per_row_bytes, sub))
        tm = min(tm, max(cap, floor))
    if tm >= rows:
        tm = rows  # full-extent block (exempt from the (8,128) divisibility rule)
    return tm, tn


def my_hinge_loss(output, target):
    # Glue: mirror torch.squeeze (drops ALL size-1 dims).
    out_sq = jnp.squeeze(output)
    tgt_sq = jnp.squeeze(target)
    assert out_sq.shape == tgt_sq.shape, (out_sq.shape, tgt_sq.shape)
    res_shape = out_sq.shape
    dtype = out_sq.dtype
    numel = math.prod(res_shape) if res_shape else 1

    if numel == 0:
        return jnp.zeros(res_shape, dtype)

    # Prefer a lane-dense flat (rows, cols) view with cols a large multiple of
    # 128; the row-major reshape is layout-free for an elementwise op.
    cols = None
    for cand in (2048, 1024, 512, 256, 128):
        if numel % cand == 0:
            cols = cand
            break
    if cols is not None:
        rows = numel // cols
    elif len(res_shape) >= 2:
        cols = res_shape[-1]
        rows = math.prod(res_shape[:-1])
    else:
        rows, cols = 1, numel  # scalar / odd-length 1-D (masked partial vregs)

    out2d = out_sq.reshape(rows, cols)
    tgt2d = tgt_sq.reshape(rows, cols)

    tm, tn = _pick_tiles(rows, cols, dtype)
    grid = (-(-rows // tm), -(-cols // tn))

    itemsize = jnp.dtype(dtype).itemsize
    block_bytes = tm * tn * itemsize
    # 2 inputs + 1 output, double-buffered, plus headroom; stays under the
    # 16 MiB v5e scoped default for normal shapes and under v7x's 64 MiB
    # physical VMEM always.
    vmem_limit = int(min(max(6 * block_bytes + (1 << 20), 16 << 20), 48 << 20))

    loss2d = pl.pallas_call(
        _hinge_kernel,
        out_shape=jax.ShapeDtypeStruct((rows, cols), dtype),
        grid=grid,
        in_specs=[
            pl.BlockSpec((tm, tn), lambda i, j: (i, j)),
            pl.BlockSpec((tm, tn), lambda i, j: (i, j)),
        ],
        out_specs=pl.BlockSpec((tm, tn), lambda i, j: (i, j)),
        compiler_params=pltpu.CompilerParams(
            dimension_semantics=("parallel", "parallel"),
            vmem_limit_bytes=vmem_limit,
        ),
        cost_estimate=pl.CostEstimate(
            flops=3 * rows * cols,
            transcendentals=0,
            bytes_accessed=3 * rows * cols * itemsize,
        ),
    )(out2d, tgt2d)

    return loss2d.reshape(res_shape)


if __name__ == "__main__":
    key = jax.random.PRNGKey(0)
    k1, k2, k3, k4 = jax.random.split(key, 4)

    # Main check: 2-D scores vs +-1 targets.  Flattened to a lane-dense
    # (128, 2048) view; tm=64 -> grid=(2, 1) so the pipeline actually steps.
    B, N = 512, 512
    output = jax.random.normal(k1, (B, N), dtype=jnp.float32)
    target = jnp.sign(jax.random.normal(k2, (B, N), dtype=jnp.float32))

    loss = my_hinge_loss(output, target)
    jax.block_until_ready(loss)

    ref = jnp.maximum(1.0 - output * target, 0.0)
    assert loss.shape == (B, N), loss.shape
    assert jnp.allclose(loss, ref, atol=1e-6), "mismatch vs reference (2D path)"

    # Secondary check: (B, N, 1) inputs exercise the torch.squeeze glue and the
    # odd-size fallback path (cols not a multiple of 128, full-extent block).
    out3d = jax.random.normal(k3, (4, 8, 1), dtype=jnp.float32)
    tgt3d = jnp.sign(jax.random.normal(k4, (4, 8, 1), dtype=jnp.float32))
    loss_small = my_hinge_loss(out3d, tgt3d)
    jax.block_until_ready(loss_small)

    ref_small = jnp.maximum(1.0 - jnp.squeeze(out3d) * jnp.squeeze(tgt3d), 0.0)
    assert loss_small.shape == (4, 8), loss_small.shape
    assert jnp.allclose(loss_small, ref_small, atol=1e-6), "mismatch (squeeze path)"

    print("KERNEL_OK")
</pallas_src>

<mosaic_0001>
module attributes {stable_mosaic.version = 11 : i64} {
  func.func @_hinge_kernel(%arg0: i32, %arg1: i32, %arg2: memref<64x2048xf32, #tpu.memory_space<vmem>>, %arg3: memref<64x2048xf32, #tpu.memory_space<vmem>>, %arg4: memref<64x2048xf32, #tpu.memory_space<vmem>>) attributes {dimension_semantics = [#tpu.dimension_semantics<parallel>, #tpu.dimension_semantics<parallel>], iteration_bounds = array<i64: 2, 1>, scalar_prefetch = 0 : i64, scratch_operands = 0 : i64, tpu.core_type = #tpu.core_type<tc>, window_params = [{transform_indices = @transform_0, window_bounds = array<i64: 64, 2048>}, {transform_indices = @transform_1, window_bounds = array<i64: 64, 2048>}, {transform_indices = @transform_2, window_bounds = array<i64: 64, 2048>}]} {
    %c0 = arith.constant 0 : index
    %c0_0 = arith.constant 0 : index
    %0 = vector.load %arg2[%c0, %c0_0] : memref<64x2048xf32, #tpu.memory_space<vmem>>, vector<64x2048xf32>
    %c0_1 = arith.constant 0 : index
    %c0_2 = arith.constant 0 : index
    %1 = vector.load %arg3[%c0_1, %c0_2] : memref<64x2048xf32, #tpu.memory_space<vmem>>, vector<64x2048xf32>
    %2 = arith.mulf %0, %1 : vector<64x2048xf32>
    %cst = arith.constant 1.000000e+00 : f32
    %3 = vector.broadcast %cst : f32 to vector<64x2048xf32>
    %4 = arith.subf %3, %2 : vector<64x2048xf32>
    %cst_3 = arith.constant 0.000000e+00 : f32
    %5 = vector.broadcast %cst_3 : f32 to vector<64x2048xf32>
    %6 = arith.maximumf %4, %5 : vector<64x2048xf32>
    %c0_4 = arith.constant 0 : index
    %c0_5 = arith.constant 0 : index
    %7 = vector.load %arg4[%c0_4, %c0_5] : memref<64x2048xf32, #tpu.memory_space<vmem>>, vector<64x2048xf32>
    tpu.vector_store %arg4[%c0_4, %c0_5], %6 {strides = array<i32>} : memref<64x2048xf32, #tpu.memory_space<vmem>>, vector<64x2048xf32>,
    return
  }
  func.func @transform_0(%arg0: i32, %arg1: i32) -> (i32, i32) {
    %c0_i32 = arith.constant 0 : i32
    return %arg0, %arg1 : i32, i32
  }
  func.func @transform_1(%arg0: i32, %arg1: i32) -> (i32, i32) {
    %c0_i32 = arith.constant 0 : i32
    return %arg0, %arg1 : i32, i32
  }
  func.func @transform_2(%arg0: i32, %arg1: i32) -> (i32, i32) {
    %c0_i32 = arith.constant 0 : i32
    return %arg0, %arg1 : i32, i32
  }
}

</mosaic_0001>

<llo_original>
// kernel: tpu_custom_call.1
$region0: #{tpu_custom_call.1}
  #allocation0 [shape = 'u32[]', space=smem, size = 0x4, offset = 0x4, fixed_abs, tag = 'smem constant byte address 0x4 - core index']
  #allocation1 [shape = 'u32[144,128]{1,0:T(1,128)}', space=vmem, size = 0x12000, scoped, tag = 'internal scratch']
  %s0 = inlined_call_operand.hbm [shape: f32[128,2048], index: 0, kind: input, shape index: {}]
  %s1 = inlined_call_operand.hbm [shape: f32[128,2048], index: 1, kind: input, shape index: {}]
  %s2 = inlined_call_operand.hbm [shape: f32[128,2048], index: 2, kind: output, shape index: {}]
  %s3 = sld [smem:[#allocation0]]
  $region49: #{tpu_custom_call.1} parent=0
    _
  %s5 = ssub.s32 1, %s3
  %s6 = scalar_select 0, %s5, %s3
  $region1: #{tpu_custom_call.1} parent=0
    #allocation2 [shape = 'u8[1048576]{0}', space=vmem, size = 0x100000, scoped, tag = 'input window, operand 0']
    #allocation3 [shape = 's32[2]{0}', space=sflag, size = 0x8, scoped, tag = 'scoped memory for tpu_custom_call.1']
    #allocation4 [shape = 's32[2]{0}', space=sflag, size = 0x8, scoped, tag = 'scoped memory for tpu_custom_call.1']
    #allocation5 [shape = 'u8[1048576]{0}', space=vmem, size = 0x100000, scoped, tag = 'input window, operand 1']
    #allocation6 [shape = 's32[2]{0}', space=sflag, size = 0x8, scoped, tag = 'scoped memory for tpu_custom_call.1']
    #allocation7 [shape = 'u8[1048576]{0}', space=vmem, size = 0x100000, scoped, tag = 'output window, operand 0']
    %7 = vsyncpa [#allocation3], 0
    %s8 = scalar_lea.sflag [#allocation3], 1
    %9 = vsyncpa %s8, 0
    %10 = vsyncpa [#allocation6], 0
    %s11 = scalar_lea.sflag [#allocation6], 1
    %12 = vsyncpa %s11, 0
    %13 = vsyncpa [#allocation4], 0
    %s14 = scalar_lea.sflag [#allocation4], 1
    %15 = vsyncpa %s14, 0
    loop: start=0, step=1, limit=4
    $region2: #{tpu_custom_call.1} parent=1 // loop_pre_header
      _
    $region3: #{tpu_custom_call.1} parent=1 // loop_header
      %s17 = sphi 0, %s21
      %p18 = scmp.ge.s32.totalorder %s17, 4
      %s24 = sphi 0, %s36
      %s25 = sphi 0, %s32
      %s26 = sphi 0, %s24
      %s27 = sphi 0, %s25
      %s28 = sphi 0, %s26
      %s29 = sphi 0, %s27
      %s41 = sphi 0, %s43
      %s44 = sphi 0, %s41
      %s45 = sphi 0, %s44
      %s61 = sphi 0, %s45
      %s69 = sphi 0, %s71
      %s72 = sphi 0, %s69
      %s73 = sphi 0, %s72
      %s89 = sphi 0, %s73
      %s97 = sphi 0, %s99
      %s100 = sphi 0, %s97
      %s101 = sphi 0, %s100
      %s117 = sphi 0, %s101
    $region4: #{tpu_custom_call.1} parent=1 // loop_header_branch
      %20 = sbr.rel (%p18) target = $region8
    $region5: #{tpu_custom_call.1} parent=1 // loop_body
      %s22 = ssub.s32 %s17, 1
      %s23 = ssub.s32 %s17, 2
      %s30 = sadd.s32 1, %s25
      %p31 = scmp.ge.s32.totalorder %s30, 1
      %s32 = scalar_select %p31, 0, %s30
      %s33 = sadd.s32 1, %s24
      %s34 = scalar_select %p31, %s33, %s24
      %p35 = scmp.ge.s32.totalorder %s34, 2
      %s36 = scalar_select %p35, 0, %s34
      %s37 = ssub.s32 %s24, %s36
      %s38 = ssub.s32 %s25, %s32
      %s39 = sor.u32 %s37, %s38
      %p40 = scmp.eq.s32.totalorder %s39, 0
      %s42 = sadd.s32 %s41, 1
      %s43 = scalar_select %p40, %s41, %s42
      %p46 = pneg %p40
      %p47 = scmp.eq.s32.totalorder %s17, 1
      %p48 = por %p46, %p47
      %p49 = scmp.ne.s32.totalorder %s41, %s44
      %p50 = scmp.eq.s32.totalorder %s17, 0
      %p51 = por %p49, %p50
      %p52 = scmp.ne.s32.totalorder %s41, %s44
      %p53 = scmp.eq.s32.totalorder %s22, 1
      %p54 = por %p52, %p53
      %p55 = scmp.ne.s32.totalorder %s44, %s45
      %p56 = scmp.eq.s32.totalorder %s22, 0
      %p57 = por %p55, %p56
      %p58 = scmp.ne.s32.totalorder %s44, %s45
      %p59 = scmp.eq.s32.totalorder %s23, 1
      %p60 = por %p58, %p59
      %p62 = scmp.ne.s32.totalorder %s45, %s61
      %p63 = scmp.eq.s32.totalorder %s23, 0
      %p64 = por %p62, %p63
      %s65 = ssub.s32 %s24, %s36
      %s66 = ssub.s32 %s25, %s32
      %s67 = sor.u32 %s65, %s66
      %p68 = scmp.eq.s32.totalorder %s67, 0
      %s70 = sadd.s32 %s69, 1
      %s71 = scalar_select %p68, %s69, %s70
      %p74 = pneg %p68
      %p75 = scmp.eq.s32.totalorder %s17, 1
      %p76 = por %p74, %p75
      %p77 = scmp.ne.s32.totalorder %s69, %s72
      %p78 = scmp.eq.s32.totalorder %s17, 0
      %p79 = por %p77, %p78
      %p80 = scmp.ne.s32.totalorder %s69, %s72
      %p81 = scmp.eq.s32.totalorder %s22, 1
      %p82 = por %p80, %p81
      %p83 = scmp.ne.s32.totalorder %s72, %s73
      %p84 = scmp.eq.s32.totalorder %s22, 0
      %p85 = por %p83, %p84
      %p86 = scmp.ne.s32.totalorder %s72, %s73
      %p87 = scmp.eq.s32.totalorder %s23, 1
      %p88 = por %p86, %p87
      %p90 = scmp.ne.s32.totalorder %s73, %s89
      %p91 = scmp.eq.s32.totalorder %s23, 0
      %p92 = por %p90, %p91
      %s93 = ssub.s32 %s24, %s36
      %s94 = ssub.s32 %s25, %s32
      %s95 = sor.u32 %s93, %s94
      %p96 = scmp.eq.s32.totalorder %s95, 0
      %s98 = sadd.s32 %s97, 1
      %s99 = scalar_select %p96, %s97, %s98
      %p102 = pneg %p96
      %p103 = scmp.eq.s32.totalorder %s17, 1
      %p104 = por %p102, %p103
      %p105 = scmp.ne.s32.totalorder %s97, %s100
      %p106 = scmp.eq.s32.totalorder %s17, 0
      %p107 = por %p105, %p106
      %p108 = scmp.ne.s32.totalorder %s97, %s100
      %p109 = scmp.eq.s32.totalorder %s22, 1
      %p110 = por %p108, %p109
      %p111 = scmp.ne.s32.totalorder %s100, %s101
      %p112 = scmp.eq.s32.totalorder %s22, 0
      %p113 = por %p111, %p112
      %p114 = scmp.ne.s32.totalorder %s100, %s101
      %p115 = scmp.eq.s32.totalorder %s23, 1
      %p116 = por %p114, %p115
      %p118 = scmp.ne.s32.totalorder %s101, %s117
      %p119 = scmp.eq.s32.totalorder %s23, 0
      %p120 = por %p118, %p119
      %p121 = scmp.le.s32.totalorder 1, %s17
      %p122 = scmp.lt.s32.totalorder %s17, 3
      %p123 = pnand %p121, %p122
      %p124 = pneg %p123
      // Predicated region
      $region9: #{tpu_custom_call.1} parent=5 // pred_check
        _
      $region10: #{tpu_custom_call.1} parent=5 // pred_check_branch
        %126 = sbr.rel (%p123) target = $region12
      $region11: #{tpu_custom_call.1} parent=5 // pred_region
        %s127 = ssub.s32 %s17, 1
      $region12: #{tpu_custom_call.1} parent=5 // pred_fallthru
        _
      %p128 = scmp.lt.s32.totalorder %s17, 2
      // Predicated region
      $region13: #{tpu_custom_call.1} parent=5 // pred_check
        %p129 = pneg %p128
      $region14: #{tpu_custom_call.1} parent=5 // pred_check_branch
        %131 = sbr.rel (%p129) target = $region16
      $region15: #{tpu_custom_call.1} parent=5 // pred_region
        // Predicated region
        $region17: #{tpu_custom_call.1} parent=15 // pred_check
          %p132 = pneg %p51
        $region18: #{tpu_custom_call.1} parent=15 // pred_check_branch
          %134 = sbr.rel (%p132) target = $region20
        $region19: #{tpu_custom_call.1} parent=15 // pred_region
          %s135 = sand.u32 %s41, 1
          %s136 = scalar_lea.sflag [#allocation3], %s135
          %s137 = sand.u32 %s41, 1
          %s138 = smul.addr %s137, 1024
          %s139 = scalar_lea.vmem [#allocation2], %s138
          %s140 = smul.u32 8, %s24
          %s141 = smul.u32 16, %s25
          %s143 = ssub.s32 16384, 16384
          %144 = vsyncadd %s136, %s143
          %s145 = smul.addr %s140, 16
          %s146 = sadd.s32 %s141, %s145
          %s147 = smul.addr %s146, 128
          %s148 = scalar_lea.hbm %s0, %s147
          %s149 = sshll.u32 %s139, 4
          %s150 = int_to_ptr.vmem [resolvable:$true] %s149
          %155 = dma.hbm_to_vmem [thread:$0]  %s148, 16384, %s150, %s136, 2048, 2048, 128
        $region20: #{tpu_custom_call.1} parent=15 // pred_fallthru
          _
        // Predicated region
        $region21: #{tpu_custom_call.1} parent=15 // pred_check
          %p156 = pneg %p79
        $region22: #{tpu_custom_call.1} parent=15 // pred_check_branch
          %158 = sbr.rel (%p156) target = $region24
        $region23: #{tpu_custom_call.1} parent=15 // pred_region
          %s159 = sand.u32 %s69, 1
          %s160 = scalar_lea.sflag [#allocation6], %s159
          %s161 = sand.u32 %s69, 1
          %s162 = smul.addr %s161, 1024
          %s163 = scalar_lea.vmem [#allocation5], %s162
          %s164 = smul.u32 8, %s24
          %s165 = smul.u32 16, %s25
          %s167 = ssub.s32 16384, 16384
          %168 = vsyncadd %s160, %s167
          %s169 = smul.addr %s164, 16
          %s170 = sadd.s32 %s165, %s169
          %s171 = smul.addr %s170, 128
          %s172 = scalar_lea.hbm %s1, %s171
          %s173 = sshll.u32 %s163, 4
          %s174 = int_to_ptr.vmem [resolvable:$true] %s173
          %179 = dma.hbm_to_vmem [thread:$0]  %s172, 16384, %s174, %s160, 2048, 2048, 128
        $region24: #{tpu_custom_call.1} parent=15 // pred_fallthru
          _
      $region16: #{tpu_custom_call.1} parent=5 // pred_fallthru
        _
      %p180 = scmp.le.s32.totalorder 1, %s17
      %p181 = scmp.lt.s32.totalorder %s17, 3
      %p182 = pnand %p180, %p181
      %p183 = pneg %p182
      // Predicated region
      $region25: #{tpu_custom_call.1} parent=5 // pred_check
        _
      $region26: #{tpu_custom_call.1} parent=5 // pred_check_branch
        %185 = sbr.rel (%p182) target = $region28
      $region27: #{tpu_custom_call.1} parent=5 // pred_region
        %s186 = ssub.s32 %s17, 1
        %s187 = sand.u32 %s44, 1
        %s188 = scalar_lea.sflag [#allocation3], %s187
        %s189 = sand.u32 %s44, 1
        %s190 = smul.addr %s189, 1024
        %s191 = scalar_lea.vmem [#allocation2], %s190
        // Predicated region
        $region29: #{tpu_custom_call.1} parent=27 // pred_check
          %p192 = pneg %p57
        $region30: #{tpu_custom_call.1} parent=27 // pred_check_branch
          %194 = sbr.rel (%p192) target = $region32
        $region31: #{tpu_custom_call.1} parent=27 // pred_region
          %195 = dma.done %s188, 16384
        $region32: #{tpu_custom_call.1} parent=27 // pred_fallthru
          _
        %s196 = sand.u32 %s72, 1
        %s197 = scalar_lea.sflag [#allocation6], %s196
        %s198 = sand.u32 %s72, 1
        %s199 = smul.addr %s198, 1024
        %s200 = scalar_lea.vmem [#allocation5], %s199
        // Predicated region
        $region33: #{tpu_custom_call.1} parent=27 // pred_check
          %p201 = pneg %p85
        $region34: #{tpu_custom_call.1} parent=27 // pred_check_branch
          %203 = sbr.rel (%p201) target = $region36
        $region35: #{tpu_custom_call.1} parent=27 // pred_region
          %204 = dma.done %s197, 16384
        $region36: #{tpu_custom_call.1} parent=27 // pred_fallthru
          _
        %s205 = sand.u32 %s44, 1
        %s206 = scalar_lea.sflag [#allocation3], %s205
        %s207 = sand.u32 %s44, 1
        %s208 = smul.addr %s207, 1024
        %s209 = scalar_lea.vmem [#allocation2], %s208
        %p210 = pneg %p57
        %p211 = pneg %p54
        %s212 = sand.u32 %s72, 1
        %s213 = scalar_lea.sflag [#allocation6], %s212
        %s214 = sand.u32 %s72, 1
        %s215 = smul.addr %s214, 1024
        %s216 = scalar_lea.vmem [#allocation5], %s215
        %p217 = pneg %p85
        %p218 = pneg %p82
        %p219 = pneg %p113
        %p220 = pneg %p110
        %s221 = sand.u32 %s100, 1
        %s222 = scalar_lea.sflag [#allocation4], %s221
        %s223 = sand.u32 %s100, 1
        %s224 = smul.addr %s223, 1024
        %s225 = scalar_lea.vmem [#allocation7], %s224
        %s226 = smul.u32 8, %s26
        %s227 = smul.u32 16, %s27
        %s228 = smul.u32 8, %s26
        %s229 = smul.u32 16, %s27
        %s230 = smul.u32 8, %s26
        %s231 = smul.u32 16, %s27
        %v232 = vld [vmem:[%s191] sm:$0xff]
        %v233 = vld [vmem:[%s191 + $0x8] sm:$0xff]
        %v234 = vld [vmem:[%s191 + $0x10] sm:$0xff]
        %v235 = vld [vmem:[%s191 + $0x18] sm:$0xff]
        %v236 = vld [vmem:[%s191 + $0x20] sm:$0xff]
        %v237 = vld [vmem:[%s191 + $0x28] sm:$0xff]
        %v238 = vld [vmem:[%s191 + $0x30] sm:$0xff]
        %v239 = vld [vmem:[%s191 + $0x38] sm:$0xff]
        %v240 = vld [vmem:[%s191 + $0x40] sm:$0xff]
        %v241 = vld [vmem:[%s191 + $0x48] sm:$0xff]
        %v242 = vld [vmem:[%s191 + $0x50] sm:$0xff]
        %v243 = vld [vmem:[%s191 + $0x58] sm:$0xff]
        %v244 = vld [vmem:[%s191 + $0x60] sm:$0xff]
        %v245 = vld [vmem:[%s191 + $0x68] sm:$0xff]
        %v246 = vld [vmem:[%s191 + $0x70] sm:$0xff]
        %v247 = vld [vmem:[%s191 + $0x78] sm:$0xff]
        %v248 = vld [vmem:[%s191 + $0x80] sm:$0xff]
        %v249 = vld [vmem:[%s191 + $0x88] sm:$0xff]
        %v250 = vld [vmem:[%s191 + $0x90] sm:$0xff]
        %v251 = vld [vmem:[%s191 + $0x98] sm:$0xff]
        %v252 = vld [vmem:[%s191 + $0xa0] sm:$0xff]
        %v253 = vld [vmem:[%s191 + $0xa8] sm:$0xff]
        %v254 = vld [vmem:[%s191 + $0xb0] sm:$0xff]
        %v255 = vld [vmem:[%s191 + $0xb8] sm:$0xff]
        %v256 = vld [vmem:[%s191 + $0xc0] sm:$0xff]
        %v257 = vld [vmem:[%s191 + $0xc8] sm:$0xff]
        %v258 = vld [vmem:[%s191 + $0xd0] sm:$0xff]
        %v259 = vld [vmem:[%s191 + $0xd8] sm:$0xff]
        %v260 = vld [vmem:[%s191 + $0xe0] sm:$0xff]
        %v261 = vld [vmem:[%s191 + $0xe8] sm:$0xff]
        %v262 = vld [vmem:[%s191 + $0xf0] sm:$0xff]
        %v263 = vld [vmem:[%s191 + $0xf8] sm:$0xff]
        %v264 = vld [vmem:[%s191 + $0x100] sm:$0xff]
        %v265 = vld [vmem:[%s191 + $0x108] sm:$0xff]
        %v266 = vld [vmem:[%s191 + $0x110] sm:$0xff]
        %v267 = vld [vmem:[%s191 + $0x118] sm:$0xff]
        %v268 = vld [vmem:[%s191 + $0x120] sm:$0xff]
        %v269 = vld [vmem:[%s191 + $0x128] sm:$0xff]
        %v270 = vld [vmem:[%s191 + $0x130] sm:$0xff]
        %v271 = vld [vmem:[%s191 + $0x138] sm:$0xff]
        %v272 = vld [vmem:[%s191 + $0x140] sm:$0xff]
        %v273 = vld [vmem:[%s191 + $0x148] sm:$0xff]
        %v274 = vld [vmem:[%s191 + $0x150] sm:$0xff]
        %v275 = vld [vmem:[%s191 + $0x158] sm:$0xff]
        %v276 = vld [vmem:[%s191 + $0x160] sm:$0xff]
        %v277 = vld [vmem:[%s191 + $0x168] sm:$0xff]
        %v278 = vld [vmem:[%s191 + $0x170] sm:$0xff]
        %v279 = vld [vmem:[%s191 + $0x178] sm:$0xff]
        %v280 = vld [vmem:[%s191 + $0x180] sm:$0xff]
        %v281 = vld [vmem:[%s191 + $0x188] sm:$0xff]
        %v282 = vld [vmem:[%s191 + $0x190] sm:$0xff]
        %v283 = vld [vmem:[%s191 + $0x198] sm:$0xff]
        %v284 = vld [vmem:[%s191 + $0x1a0] sm:$0xff]
        %v285 = vld [vmem:[%s191 + $0x1a8] sm:$0xff]
        %v286 = vld [vmem:[%s191 + $0x1b0] sm:$0xff]
        %v287 = vld [vmem:[%s191 + $0x1b8] sm:$0xff]
        %v288 = vld [vmem:[%s191 + $0x1c0] sm:$0xff]
        %v289 = vld [vmem:[%s191 + $0x1c8] sm:$0xff]
        %v290 = vld [vmem:[%s191 + $0x1d0] sm:$0xff]
        %v291 = vld [vmem:[%s191 + $0x1d8] sm:$0xff]
        %v292 = vld [vmem:[%s191 + $0x1e0] sm:$0xff]
        %v293 = vld [vmem:[%s191 + $0x1e8] sm:$0xff]
        %v294 = vld [vmem:[%s191 + $0x1f0] sm:$0xff]
        %v295 = vld [vmem:[%s191 + $0x1f8] sm:$0xff]
        %v296 = vld [vmem:[%s191 + $0x200] sm:$0xff]
        %v297 = vld [vmem:[%s191 + $0x208] sm:$0xff]
        %v298 = vld [vmem:[%s191 + $0x210] sm:$0xff]
        %v299 = vld [vmem:[%s191 + $0x218] sm:$0xff]
        %v300 = vld [vmem:[%s191 + $0x220] sm:$0xff]
        %v301 = vld [vmem:[%s191 + $0x228] sm:$0xff]
        %v302 = vld [vmem:[%s191 + $0x230] sm:$0xff]
        %v303 = vld [vmem:[%s191 + $0x238] sm:$0xff]
        %v304 = vld [vmem:[%s191 + $0x240] sm:$0xff]
        %v305 = vld [vmem:[%s191 + $0x248] sm:$0xff]
        %v306 = vld [vmem:[%s191 + $0x250] sm:$0xff]
        %v307 = vld [vmem:[%s191 + $0x258] sm:$0xff]
        %v308 = vld [vmem:[%s191 + $0x260] sm:$0xff]
        %v309 = vld [vmem:[%s191 + $0x268] sm:$0xff]
        %v310 = vld [vmem:[%s191 + $0x270] sm:$0xff]
        %v311 = vld [vmem:[%s191 + $0x278] sm:$0xff]
        %v312 = vld [vmem:[%s191 + $0x280] sm:$0xff]
        %v313 = vld [vmem:[%s191 + $0x288] sm:$0xff]
        %v314 = vld [vmem:[%s191 + $0x290] sm:$0xff]
        %v315 = vld [vmem:[%s191 + $0x298] sm:$0xff]
        %v316 = vld [vmem:[%s191 + $0x2a0] sm:$0xff]
        %v317 = vld [vmem:[%s191 + $0x2a8] sm:$0xff]
        %v318 = vld [vmem:[%s191 + $0x2b0] sm:$0xff]
        %v319 = vld [vmem:[%s191 + $0x2b8] sm:$0xff]
        %v320 = vld [vmem:[%s191 + $0x2c0] sm:$0xff]
        %v321 = vld [vmem:[%s191 + $0x2c8] sm:$0xff]
        %v322 = vld [vmem:[%s191 + $0x2d0] sm:$0xff]
        %v323 = vld [vmem:[%s191 + $0x2d8] sm:$0xff]
        %v324 = vld [vmem:[%s191 + $0x2e0] sm:$0xff]
        %v325 = vld [vmem:[%s191 + $0x2e8] sm:$0xff]
        %v326 = vld [vmem:[%s191 + $0x2f0] sm:$0xff]
        %v327 = vld [vmem:[%s191 + $0x2f8] sm:$0xff]
        %v328 = vld [vmem:[%s191 + $0x300] sm:$0xff]
        %v329 = vld [vmem:[%s191 + $0x308] sm:$0xff]
        %v330 = vld [vmem:[%s191 + $0x310] sm:$0xff]
        %v331 = vld [vmem:[%s191 + $0x318] sm:$0xff]
        %v332 = vld [vmem:[%s191 + $0x320] sm:$0xff]
        %v333 = vld [vmem:[%s191 + $0x328] sm:$0xff]
        %v334 = vld [vmem:[%s191 + $0x330] sm:$0xff]
        %v335 = vld [vmem:[%s191 + $0x338] sm:$0xff]
        %v336 = vld [vmem:[%s191 + $0x340] sm:$0xff]
        %v337 = vld [vmem:[%s191 + $0x348] sm:$0xff]
        %v338 = vld [vmem:[%s191 + $0x350] sm:$0xff]
        %v339 = vld [vmem:[%s191 + $0x358] sm:$0xff]
        %v340 = vld [vmem:[%s191 + $0x360] sm:$0xff]
        %v341 = vld [vmem:[%s191 + $0x368] sm:$0xff]
        %v342 = vld [vmem:[%s191 + $0x370] sm:$0xff]
        %v343 = vld [vmem:[%s191 + $0x378] sm:$0xff]
        %v344 = vld [vmem:[%s191 + $0x380] sm:$0xff]
        %v345 = vld [vmem:[%s191 + $0x388] sm:$0xff]
        %v346 = vld [vmem:[%s191 + $0x390] sm:$0xff]
        %v347 = vld [vmem:[%s191 + $0x398] sm:$0xff]
        %v348 = vld [vmem:[%s191 + $0x3a0] sm:$0xff]
        %v349 = vld [vmem:[%s191 + $0x3a8] sm:$0xff]
        %v350 = vld [vmem:[%s191 + $0x3b0] sm:$0xff]
        %v351 = vld [vmem:[%s191 + $0x3b8] sm:$0xff]
        %v352 = vld [vmem:[%s191 + $0x3c0] sm:$0xff]
        %v353 = vld [vmem:[%s191 + $0x3c8] sm:$0xff]
        %v354 = vld [vmem:[%s191 + $0x3d0] sm:$0xff]
        %v355 = vld [vmem:[%s191 + $0x3d8] sm:$0xff]
        %v356 = vld [vmem:[%s191 + $0x3e0] sm:$0xff]
        %v357 = vld [vmem:[%s191 + $0x3e8] sm:$0xff]
        %v358 = vld [vmem:[%s191 + $0x3f0] sm:$0xff]
        %v359 = vld [vmem:[%s191 + $0x3f8] sm:$0xff]
        %v360 = vld [vmem:[%s200] sm:$0xff]
        %v361 = vld [vmem:[%s200 + $0x8] sm:$0xff]
        %v362 = vld [vmem:[%s200 + $0x10] sm:$0xff]
        %v363 = vld [vmem:[%s200 + $0x18] sm:$0xff]
        %v364 = vld [vmem:[%s200 + $0x20] sm:$0xff]
        %v365 = vld [vmem:[%s200 + $0x28] sm:$0xff]
        %v366 = vld [vmem:[%s200 + $0x30] sm:$0xff]
        %v367 = vld [vmem:[%s200 + $0x38] sm:$0xff]
        %v368 = vld [vmem:[%s200 + $0x40] sm:$0xff]
        %v369 = vld [vmem:[%s200 + $0x48] sm:$0xff]
        %v370 = vld [vmem:[%s200 + $0x50] sm:$0xff]
        %v371 = vld [vmem:[%s200 + $0x58] sm:$0xff]
        %v372 = vld [vmem:[%s200 + $0x60] sm:$0xff]
        %v373 = vld [vmem:[%s200 + $0x68] sm:$0xff]
        %v374 = vld [vmem:[%s200 + $0x70] sm:$0xff]
        %v375 = vld [vmem:[%s200 + $0x78] sm:$0xff]
        %v376 = vld [vmem:[%s200 + $0x80] sm:$0xff]
        %v377 = vld [vmem:[%s200 + $0x88] sm:$0xff]
        %v378 = vld [vmem:[%s200 + $0x90] sm:$0xff]
        %v379 = vld [vmem:[%s200 + $0x98] sm:$0xff]
        %v380 = vld [vmem:[%s200 + $0xa0] sm:$0xff]
        %v381 = vld [vmem:[%s200 + $0xa8] sm:$0xff]
        %v382 = vld [vmem:[%s200 + $0xb0] sm:$0xff]
        %v383 = vld [vmem:[%s200 + $0xb8] sm:$0xff]
        %v384 = vld [vmem:[%s200 + $0xc0] sm:$0xff]
        %v385 = vld [vmem:[%s200 + $0xc8] sm:$0xff]
        %v386 = vld [vmem:[%s200 + $0xd0] sm:$0xff]
        %v387 = vld [vmem:[%s200 + $0xd8] sm:$0xff]
        %v388 = vld [vmem:[%s200 + $0xe0] sm:$0xff]
        %v389 = vld [vmem:[%s200 + $0xe8] sm:$0xff]
        %v390 = vld [vmem:[%s200 + $0xf0] sm:$0xff]
        %v391 = vld [vmem:[%s200 + $0xf8] sm:$0xff]
        %v392 = vld [vmem:[%s200 + $0x100] sm:$0xff]
        %v393 = vld [vmem:[%s200 + $0x108] sm:$0xff]
        %v394 = vld [vmem:[%s200 + $0x110] sm:$0xff]
        %v395 = vld [vmem:[%s200 + $0x118] sm:$0xff]
        %v396 = vld [vmem:[%s200 + $0x120] sm:$0xff]
        %v397 = vld [vmem:[%s200 + $0x128] sm:$0xff]
        %v398 = vld [vmem:[%s200 + $0x130] sm:$0xff]
        %v399 = vld [vmem:[%s200 + $0x138] sm:$0xff]
        %v400 = vld [vmem:[%s200 + $0x140] sm:$0xff]
        %v401 = vld [vmem:[%s200 + $0x148] sm:$0xff]
        %v402 = vld [vmem:[%s200 + $0x150] sm:$0xff]
        %v403 = vld [vmem:[%s200 + $0x158] sm:$0xff]
        %v404 = vld [vmem:[%s200 + $0x160] sm:$0xff]
        %v405 = vld [vmem:[%s200 + $0x168] sm:$0xff]
        %v406 = vld [vmem:[%s200 + $0x170] sm:$0xff]
        %v407 = vld [vmem:[%s200 + $0x178] sm:$0xff]
        %v408 = vld [vmem:[%s200 + $0x180] sm:$0xff]
        %v409 = vld [vmem:[%s200 + $0x188] sm:$0xff]
        %v410 = vld [vmem:[%s200 + $0x190] sm:$0xff]
        %v411 = vld [vmem:[%s200 + $0x198] sm:$0xff]
        %v412 = vld [vmem:[%s200 + $0x1a0] sm:$0xff]
        %v413 = vld [vmem:[%s200 + $0x1a8] sm:$0xff]
        %v414 = vld [vmem:[%s200 + $0x1b0] sm:$0xff]
        %v415 = vld [vmem:[%s200 + $0x1b8] sm:$0xff]
        %v416 = vld [vmem:[%s200 + $0x1c0] sm:$0xff]
        %v417 = vld [vmem:[%s200 + $0x1c8] sm:$0xff]
        %v418 = vld [vmem:[%s200 + $0x1d0] sm:$0xff]
        %v419 = vld [vmem:[%s200 + $0x1d8] sm:$0xff]
        %v420 = vld [vmem:[%s200 + $0x1e0] sm:$0xff]
        %v421 = vld [vmem:[%s200 + $0x1e8] sm:$0xff]
        %v422 = vld [vmem:[%s200 + $0x1f0] sm:$0xff]
        %v423 = vld [vmem:[%s200 + $0x1f8] sm:$0xff]
        %v424 = vld [vmem:[%s200 + $0x200] sm:$0xff]
        %v425 = vld [vmem:[%s200 + $0x208] sm:$0xff]
        %v426 = vld [vmem:[%s200 + $0x210] sm:$0xff]
        %v427 = vld [vmem:[%s200 + $0x218] sm:$0xff]
        %v428 = vld [vmem:[%s200 + $0x220] sm:$0xff]
        %v429 = vld [vmem:[%s200 + $0x228] sm:$0xff]
        %v430 = vld [vmem:[%s200 + $0x230] sm:$0xff]
        %v431 = vld [vmem:[%s200 + $0x238] sm:$0xff]
        %v432 = vld [vmem:[%s200 + $0x240] sm:$0xff]
        %v433 = vld [vmem:[%s200 + $0x248] sm:$0xff]
        %v434 = vld [vmem:[%s200 + $0x250] sm:$0xff]
        %v435 = vld [vmem:[%s200 + $0x258] sm:$0xff]
        %v436 = vld [vmem:[%s200 + $0x260] sm:$0xff]
        %v437 = vld [vmem:[%s200 + $0x268] sm:$0xff]
        %v438 = vld [vmem:[%s200 + $0x270] sm:$0xff]
        %v439 = vld [vmem:[%s200 + $0x278] sm:$0xff]
        %v440 = vld [vmem:[%s200 + $0x280] sm:$0xff]
        %v441 = vld [vmem:[%s200 + $0x288] sm:$0xff]
        %v442 = vld [vmem:[%s200 + $0x290] sm:$0xff]
        %v443 = vld [vmem:[%s200 + $0x298] sm:$0xff]
        %v444 = vld [vmem:[%s200 + $0x2a0] sm:$0xff]
        %v445 = vld [vmem:[%s200 + $0x2a8] sm:$0xff]
        %v446 = vld [vmem:[%s200 + $0x2b0] sm:$0xff]
        %v447 = vld [vmem:[%s200 + $0x2b8] sm:$0xff]
        %v448 = vld [vmem:[%s200 + $0x2c0] sm:$0xff]
        %v449 = vld [vmem:[%s200 + $0x2c8] sm:$0xff]
        %v450 = vld [vmem:[%s200 + $0x2d0] sm:$0xff]
        %v451 = vld [vmem:[%s200 + $0x2d8] sm:$0xff]
        %v452 = vld [vmem:[%s200 + $0x2e0] sm:$0xff]
        %v453 = vld [vmem:[%s200 + $0x2e8] sm:$0xff]
        %v454 = vld [vmem:[%s200 + $0x2f0] sm:$0xff]
        %v455 = vld [vmem:[%s200 + $0x2f8] sm:$0xff]
        %v456 = vld [vmem:[%s200 + $0x300] sm:$0xff]
        %v457 = vld [vmem:[%s200 + $0x308] sm:$0xff]
        %v458 = vld [vmem:[%s200 + $0x310] sm:$0xff]
        %v459 = vld [vmem:[%s200 + $0x318] sm:$0xff]
        %v460 = vld [vmem:[%s200 + $0x320] sm:$0xff]
        %v461 = vld [vmem:[%s200 + $0x328] sm:$0xff]
        %v462 = vld [vmem:[%s200 + $0x330] sm:$0xff]
        %v463 = vld [vmem:[%s200 + $0x338] sm:$0xff]
        %v464 = vld [vmem:[%s200 + $0x340] sm:$0xff]
        %v465 = vld [vmem:[%s200 + $0x348] sm:$0xff]
        %v466 = vld [vmem:[%s200 + $0x350] sm:$0xff]
        %v467 = vld [vmem:[%s200 + $0x358] sm:$0xff]
        %v468 = vld [vmem:[%s200 + $0x360] sm:$0xff]
        %v469 = vld [vmem:[%s200 + $0x368] sm:$0xff]
        %v470 = vld [vmem:[%s200 + $0x370] sm:$0xff]
        %v471 = vld [vmem:[%s200 + $0x378] sm:$0xff]
        %v472 = vld [vmem:[%s200 + $0x380] sm:$0xff]
        %v473 = vld [vmem:[%s200 + $0x388] sm:$0xff]
        %v474 = vld [vmem:[%s200 + $0x390] sm:$0xff]
        %v475 = vld [vmem:[%s200 + $0x398] sm:$0xff]
        %v476 = vld [vmem:[%s200 + $0x3a0] sm:$0xff]
        %v477 = vld [vmem:[%s200 + $0x3a8] sm:$0xff]
        %v478 = vld [vmem:[%s200 + $0x3b0] sm:$0xff]
        %v479 = vld [vmem:[%s200 + $0x3b8] sm:$0xff]
        %v480 = vld [vmem:[%s200 + $0x3c0] sm:$0xff]
        %v481 = vld [vmem:[%s200 + $0x3c8] sm:$0xff]
        %v482 = vld [vmem:[%s200 + $0x3d0] sm:$0xff]
        %v483 = vld [vmem:[%s200 + $0x3d8] sm:$0xff]
        %v484 = vld [vmem:[%s200 + $0x3e0] sm:$0xff]
        %v485 = vld [vmem:[%s200 + $0x3e8] sm:$0xff]
        %v486 = vld [vmem:[%s200 + $0x3f0] sm:$0xff]
        %v487 = vld [vmem:[%s200 + $0x3f8] sm:$0xff]
        %v488 = vmul.f32 %v232, %v360
        %v489 = vmul.f32 %v233, %v361
        %v490 = vmul.f32 %v234, %v362
        %v491 = vmul.f32 %v235, %v363
        %v492 = vmul.f32 %v236, %v364
        %v493 = vmul.f32 %v237, %v365
        %v494 = vmul.f32 %v238, %v366
        %v495 = vmul.f32 %v239, %v367
        %v496 = vmul.f32 %v240, %v368
        %v497 = vmul.f32 %v241, %v369
        %v498 = vmul.f32 %v242, %v370
        %v499 = vmul.f32 %v243, %v371
        %v500 = vmul.f32 %v244, %v372
        %v501 = vmul.f32 %v245, %v373
        %v502 = vmul.f32 %v246, %v374
        %v503 = vmul.f32 %v247, %v375
        %v504 = vmul.f32 %v248, %v376
        %v505 = vmul.f32 %v249, %v377
        %v506 = vmul.f32 %v250, %v378
        %v507 = vmul.f32 %v251, %v379
        %v508 = vmul.f32 %v252, %v380
        %v509 = vmul.f32 %v253, %v381
        %v510 = vmul.f32 %v254, %v382
        %v511 = vmul.f32 %v255, %v383
        %v512 = vmul.f32 %v256, %v384
        %v513 = vmul.f32 %v257, %v385
        %v514 = vmul.f32 %v258, %v386
        %v515 = vmul.f32 %v259, %v387
        %v516 = vmul.f32 %v260, %v388
        %v517 = vmul.f32 %v261, %v389
        %v518 = vmul.f32 %v262, %v390
        %v519 = vmul.f32 %v263, %v391
        %v520 = vmul.f32 %v264, %v392
        %v521 = vmul.f32 %v265, %v393
        %v522 = vmul.f32 %v266, %v394
        %v523 = vmul.f32 %v267, %v395
        %v524 = vmul.f32 %v268, %v396
        %v525 = vmul.f32 %v269, %v397
        %v526 = vmul.f32 %v270, %v398
        %v527 = vmul.f32 %v271, %v399
        %v528 = vmul.f32 %v272, %v400
        %v529 = vmul.f32 %v273, %v401
        %v530 = vmul.f32 %v274, %v402
        %v531 = vmul.f32 %v275, %v403
        %v532 = vmul.f32 %v276, %v404
        %v533 = vmul.f32 %v277, %v405
        %v534 = vmul.f32 %v278, %v406
        %v535 = vmul.f32 %v279, %v407
        %v536 = vmul.f32 %v280, %v408
        %v537 = vmul.f32 %v281, %v409
        %v538 = vmul.f32 %v282, %v410
        %v539 = vmul.f32 %v283, %v411
        %v540 = vmul.f32 %v284, %v412
        %v541 = vmul.f32 %v285, %v413
        %v542 = vmul.f32 %v286, %v414
        %v543 = vmul.f32 %v287, %v415
        %v544 = vmul.f32 %v288, %v416
        %v545 = vmul.f32 %v289, %v417
        %v546 = vmul.f32 %v290, %v418
        %v547 = vmul.f32 %v291, %v419
        %v548 = vmul.f32 %v292, %v420
        %v549 = vmul.f32 %v293, %v421
        %v550 = vmul.f32 %v294, %v422
        %v551 = vmul.f32 %v295, %v423
        %v552 = vmul.f32 %v296, %v424
        %v553 = vmul.f32 %v297, %v425
        %v554 = vmul.f32 %v298, %v426
        %v555 = vmul.f32 %v299, %v427
        %v556 = vmul.f32 %v300, %v428
        %v557 = vmul.f32 %v301, %v429
        %v558 = vmul.f32 %v302, %v430
        %v559 = vmul.f32 %v303, %v431
        %v560 = vmul.f32 %v304, %v432
        %v561 = vmul.f32 %v305, %v433
        %v562 = vmul.f32 %v306, %v434
        %v563 = vmul.f32 %v307, %v435
        %v564 = vmul.f32 %v308, %v436
        %v565 = vmul.f32 %v309, %v437
        %v566 = vmul.f32 %v310, %v438
        %v567 = vmul.f32 %v311, %v439
        %v568 = vmul.f32 %v312, %v440
        %v569 = vmul.f32 %v313, %v441
        %v570 = vmul.f32 %v314, %v442
        %v571 = vmul.f32 %v315, %v443
        %v572 = vmul.f32 %v316, %v444
        %v573 = vmul.f32 %v317, %v445
        %v574 = vmul.f32 %v318, %v446
        %v575 = vmul.f32 %v319, %v447
        %v576 = vmul.f32 %v320, %v448
        %v577 = vmul.f32 %v321, %v449
        %v578 = vmul.f32 %v322, %v450
        %v579 = vmul.f32 %v323, %v451
        %v580 = vmul.f32 %v324, %v452
        %v581 = vmul.f32 %v325, %v453
        %v582 = vmul.f32 %v326, %v454
        %v583 = vmul.f32 %v327, %v455
        %v584 = vmul.f32 %v328, %v456
        %v585 = vmul.f32 %v329, %v457
        %v586 = vmul.f32 %v330, %v458
        %v587 = vmul.f32 %v331, %v459
        %v588 = vmul.f32 %v332, %v460
        %v589 = vmul.f32 %v333, %v461
        %v590 = vmul.f32 %v334, %v462
        %v591 = vmul.f32 %v335, %v463
        %v592 = vmul.f32 %v336, %v464
        %v593 = vmul.f32 %v337, %v465
        %v594 = vmul.f32 %v338, %v466
        %v595 = vmul.f32 %v339, %v467
        %v596 = vmul.f32 %v340, %v468
        %v597 = vmul.f32 %v341, %v469
        %v598 = vmul.f32 %v342, %v470
        %v599 = vmul.f32 %v343, %v471
        %v600 = vmul.f32 %v344, %v472
        %v601 = vmul.f32 %v345, %v473
        %v602 = vmul.f32 %v346, %v474
        %v603 = vmul.f32 %v347, %v475
        %v604 = vmul.f32 %v348, %v476
        %v605 = vmul.f32 %v349, %v477
        %v606 = vmul.f32 %v350, %v478
        %v607 = vmul.f32 %v351, %v479
        %v608 = vmul.f32 %v352, %v480
        %v609 = vmul.f32 %v353, %v481
        %v610 = vmul.f32 %v354, %v482
        %v611 = vmul.f32 %v355, %v483
        %v612 = vmul.f32 %v356, %v484
        %v613 = vmul.f32 %v357, %v485
        %v614 = vmul.f32 %v358, %v486
        %v615 = vmul.f32 %v359, %v487
        %v616 = vsub.f32 1.0, %v488
        %v617 = vsub.f32 1.0, %v489
        %v618 = vsub.f32 1.0, %v490
        %v619 = vsub.f32 1.0, %v491
        %v620 = vsub.f32 1.0, %v492
        %v621 = vsub.f32 1.0, %v493
        %v622 = vsub.f32 1.0, %v494
        %v623 = vsub.f32 1.0, %v495
        %v624 = vsub.f32 1.0, %v496
        %v625 = vsub.f32 1.0, %v497
        %v626 = vsub.f32 1.0, %v498
        %v627 = vsub.f32 1.0, %v499
        %v628 = vsub.f32 1.0, %v500
        %v629 = vsub.f32 1.0, %v501
        %v630 = vsub.f32 1.0, %v502
        %v631 = vsub.f32 1.0, %v503
        %v632 = vsub.f32 1.0, %v504
        %v633 = vsub.f32 1.0, %v505
        %v634 = vsub.f32 1.0, %v506
        %v635 = vsub.f32 1.0, %v507
        %v636 = vsub.f32 1.0, %v508
        %v637 = vsub.f32 1.0, %v509
        %v638 = vsub.f32 1.0, %v510
        %v639 = vsub.f32 1.0, %v511
        %v640 = vsub.f32 1.0, %v512
        %v641 = vsub.f32 1.0, %v513
        %v642 = vsub.f32 1.0, %v514
        %v643 = vsub.f32 1.0, %v515
        %v644 = vsub.f32 1.0, %v516
        %v645 = vsub.f32 1.0, %v517
        %v646 = vsub.f32 1.0, %v518
        %v647 = vsub.f32 1.0, %v519
        %v648 = vsub.f32 1.0, %v520
        %v649 = vsub.f32 1.0, %v521
        %v650 = vsub.f32 1.0, %v522
        %v651 = vsub.f32 1.0, %v523
        %v652 = vsub.f32 1.0, %v524
        %v653 = vsub.f32 1.0, %v525
        %v654 = vsub.f32 1.0, %v526
        %v655 = vsub.f32 1.0, %v527
        %v656 = vsub.f32 1.0, %v528
        %v657 = vsub.f32 1.0, %v529
        %v658 = vsub.f32 1.0, %v530
        %v659 = vsub.f32 1.0, %v531
        %v660 = vsub.f32 1.0, %v532
        %v661 = vsub.f32 1.0, %v533
        %v662 = vsub.f32 1.0, %v534
        %v663 = vsub.f32 1.0, %v535
        %v664 = vsub.f32 1.0, %v536
        %v665 = vsub.f32 1.0, %v537
        %v666 = vsub.f32 1.0, %v538
        %v667 = vsub.f32 1.0, %v539
        %v668 = vsub.f32 1.0, %v540
        %v669 = vsub.f32 1.0, %v541
        %v670 = vsub.f32 1.0, %v542
        %v671 = vsub.f32 1.0, %v543
        %v672 = vsub.f32 1.0, %v544
        %v673 = vsub.f32 1.0, %v545
        %v674 = vsub.f32 1.0, %v546
        %v675 = vsub.f32 1.0, %v547
        %v676 = vsub.f32 1.0, %v548
        %v677 = vsub.f32 1.0, %v549
        %v678 = vsub.f32 1.0, %v550
        %v679 = vsub.f32 1.0, %v551
        %v680 = vsub.f32 1.0, %v552
        %v681 = vsub.f32 1.0, %v553
        %v682 = vsub.f32 1.0, %v554
        %v683 = vsub.f32 1.0, %v555
        %v684 = vsub.f32 1.0, %v556
        %v685 = vsub.f32 1.0, %v557
        %v686 = vsub.f32 1.0, %v558
        %v687 = vsub.f32 1.0, %v559
        %v688 = vsub.f32 1.0, %v560
        %v689 = vsub.f32 1.0, %v561
        %v690 = vsub.f32 1.0, %v562
        %v691 = vsub.f32 1.0, %v563
        %v692 = vsub.f32 1.0, %v564
        %v693 = vsub.f32 1.0, %v565
        %v694 = vsub.f32 1.0, %v566
        %v695 = vsub.f32 1.0, %v567
        %v696 = vsub.f32 1.0, %v568
        %v697 = vsub.f32 1.0, %v569
        %v698 = vsub.f32 1.0, %v570
        %v699 = vsub.f32 1.0, %v571
        %v700 = vsub.f32 1.0, %v572
        %v701 = vsub.f32 1.0, %v573
        %v702 = vsub.f32 1.0, %v574
        %v703 = vsub.f32 1.0, %v575
        %v704 = vsub.f32 1.0, %v576
        %v705 = vsub.f32 1.0, %v577
        %v706 = vsub.f32 1.0, %v578
        %v707 = vsub.f32 1.0, %v579
        %v708 = vsub.f32 1.0, %v580
        %v709 = vsub.f32 1.0, %v581
        %v710 = vsub.f32 1.0, %v582
        %v711 = vsub.f32 1.0, %v583
        %v712 = vsub.f32 1.0, %v584
        %v713 = vsub.f32 1.0, %v585
        %v714 = vsub.f32 1.0, %v586
        %v715 = vsub.f32 1.0, %v587
        %v716 = vsub.f32 1.0, %v588
        %v717 = vsub.f32 1.0, %v589
        %v718 = vsub.f32 1.0, %v590
        %v719 = vsub.f32 1.0, %v591
        %v720 = vsub.f32 1.0, %v592
        %v721 = vsub.f32 1.0, %v593
        %v722 = vsub.f32 1.0, %v594
        %v723 = vsub.f32 1.0, %v595
        %v724 = vsub.f32 1.0, %v596
        %v725 = vsub.f32 1.0, %v597
        %v726 = vsub.f32 1.0, %v598
        %v727 = vsub.f32 1.0, %v599
        %v728 = vsub.f32 1.0, %v600
        %v729 = vsub.f32 1.0, %v601
        %v730 = vsub.f32 1.0, %v602
        %v731 = vsub.f32 1.0, %v603
        %v732 = vsub.f32 1.0, %v604
        %v733 = vsub.f32 1.0, %v605
        %v734 = vsub.f32 1.0, %v606
        %v735 = vsub.f32 1.0, %v607
        %v736 = vsub.f32 1.0, %v608
        %v737 = vsub.f32 1.0, %v609
        %v738 = vsub.f32 1.0, %v610
        %v739 = vsub.f32 1.0, %v611
        %v740 = vsub.f32 1.0, %v612
        %v741 = vsub.f32 1.0, %v613
        %v742 = vsub.f32 1.0, %v614
        %v743 = vsub.f32 1.0, %v615
        %v744 = vmax.f32 %v616, 0.0
        %v745 = vmax.f32 %v617, 0.0
        %v746 = vmax.f32 %v618, 0.0
        %v747 = vmax.f32 %v619, 0.0
        %v748 = vmax.f32 %v620, 0.0
        %v749 = vmax.f32 %v621, 0.0
        %v750 = vmax.f32 %v622, 0.0
        %v751 = vmax.f32 %v623, 0.0
        %v752 = vmax.f32 %v624, 0.0
        %v753 = vmax.f32 %v625, 0.0
        %v754 = vmax.f32 %v626, 0.0
        %v755 = vmax.f32 %v627, 0.0
        %v756 = vmax.f32 %v628, 0.0
        %v757 = vmax.f32 %v629, 0.0
        %v758 = vmax.f32 %v630, 0.0
        %v759 = vmax.f32 %v631, 0.0
        %v760 = vmax.f32 %v632, 0.0
        %v761 = vmax.f32 %v633, 0.0
        %v762 = vmax.f32 %v634, 0.0
        %v763 = vmax.f32 %v635, 0.0
        %v764 = vmax.f32 %v636, 0.0
        %v765 = vmax.f32 %v637, 0.0
        %v766 = vmax.f32 %v638, 0.0
        %v767 = vmax.f32 %v639, 0.0
        %v768 = vmax.f32 %v640, 0.0
        %v769 = vmax.f32 %v641, 0.0
        %v770 = vmax.f32 %v642, 0.0
        %v771 = vmax.f32 %v643, 0.0
        %v772 = vmax.f32 %v644, 0.0
        %v773 = vmax.f32 %v645, 0.0
        %v774 = vmax.f32 %v646, 0.0
        %v775 = vmax.f32 %v647, 0.0
        %v776 = vmax.f32 %v648, 0.0
        %v777 = vmax.f32 %v649, 0.0
        %v778 = vmax.f32 %v650, 0.0
        %v779 = vmax.f32 %v651, 0.0
        %v780 = vmax.f32 %v652, 0.0
        %v781 = vmax.f32 %v653, 0.0
        %v782 = vmax.f32 %v654, 0.0
        %v783 = vmax.f32 %v655, 0.0
        %v784 = vmax.f32 %v656, 0.0
        %v785 = vmax.f32 %v657, 0.0
        %v786 = vmax.f32 %v658, 0.0
        %v787 = vmax.f32 %v659, 0.0
        %v788 = vmax.f32 %v660, 0.0
        %v789 = vmax.f32 %v661, 0.0
        %v790 = vmax.f32 %v662, 0.0
        %v791 = vmax.f32 %v663, 0.0
        %v792 = vmax.f32 %v664, 0.0
        %v793 = vmax.f32 %v665, 0.0
        %v794 = vmax.f32 %v666, 0.0
        %v795 = vmax.f32 %v667, 0.0
        %v796 = vmax.f32 %v668, 0.0
        %v797 = vmax.f32 %v669, 0.0
        %v798 = vmax.f32 %v670, 0.0
        %v799 = vmax.f32 %v671, 0.0
        %v800 = vmax.f32 %v672, 0.0
        %v801 = vmax.f32 %v673, 0.0
        %v802 = vmax.f32 %v674, 0.0
        %v803 = vmax.f32 %v675, 0.0
        %v804 = vmax.f32 %v676, 0.0
        %v805 = vmax.f32 %v677, 0.0
        %v806 = vmax.f32 %v678, 0.0
        %v807 = vmax.f32 %v679, 0.0
        %v808 = vmax.f32 %v680, 0.0
        %v809 = vmax.f32 %v681, 0.0
        %v810 = vmax.f32 %v682, 0.0
        %v811 = vmax.f32 %v683, 0.0
        %v812 = vmax.f32 %v684, 0.0
        %v813 = vmax.f32 %v685, 0.0
        %v814 = vmax.f32 %v686, 0.0
        %v815 = vmax.f32 %v687, 0.0
        %v816 = vmax.f32 %v688, 0.0
        %v817 = vmax.f32 %v689, 0.0
        %v818 = vmax.f32 %v690, 0.0
        %v819 = vmax.f32 %v691, 0.0
        %v820 = vmax.f32 %v692, 0.0
        %v821 = vmax.f32 %v693, 0.0
        %v822 = vmax.f32 %v694, 0.0
        %v823 = vmax.f32 %v695, 0.0
        %v824 = vmax.f32 %v696, 0.0
        %v825 = vmax.f32 %v697, 0.0
        %v826 = vmax.f32 %v698, 0.0
        %v827 = vmax.f32 %v699, 0.0
        %v828 = vmax.f32 %v700, 0.0
        %v829 = vmax.f32 %v701, 0.0
        %v830 = vmax.f32 %v702, 0.0
        %v831 = vmax.f32 %v703, 0.0
        %v832 = vmax.f32 %v704, 0.0
        %v833 = vmax.f32 %v705, 0.0
        %v834 = vmax.f32 %v706, 0.0
        %v835 = vmax.f32 %v707, 0.0
        %v836 = vmax.f32 %v708, 0.0
        %v837 = vmax.f32 %v709, 0.0
        %v838 = vmax.f32 %v710, 0.0
        %v839 = vmax.f32 %v711, 0.0
        %v840 = vmax.f32 %v712, 0.0
        %v841 = vmax.f32 %v713, 0.0
        %v842 = vmax.f32 %v714, 0.0
        %v843 = vmax.f32 %v715, 0.0
        %v844 = vmax.f32 %v716, 0.0
        %v845 = vmax.f32 %v717, 0.0
        %v846 = vmax.f32 %v718, 0.0
        %v847 = vmax.f32 %v719, 0.0
        %v848 = vmax.f32 %v720, 0.0
        %v849 = vmax.f32 %v721, 0.0
        %v850 = vmax.f32 %v722, 0.0
        %v851 = vmax.f32 %v723, 0.0
        %v852 = vmax.f32 %v724, 0.0
        %v853 = vmax.f32 %v725, 0.0
        %v854 = vmax.f32 %v726, 0.0
        %v855 = vmax.f32 %v727, 0.0
        %v856 = vmax.f32 %v728, 0.0
        %v857 = vmax.f32 %v729, 0.0
        %v858 = vmax.f32 %v730, 0.0
        %v859 = vmax.f32 %v731, 0.0
        %v860 = vmax.f32 %v732, 0.0
        %v861 = vmax.f32 %v733, 0.0
        %v862 = vmax.f32 %v734, 0.0
        %v863 = vmax.f32 %v735, 0.0
        %v864 = vmax.f32 %v736, 0.0
        %v865 = vmax.f32 %v737, 0.0
        %v866 = vmax.f32 %v738, 0.0
        %v867 = vmax.f32 %v739, 0.0
        %v868 = vmax.f32 %v740, 0.0
        %v869 = vmax.f32 %v741, 0.0
        %v870 = vmax.f32 %v742, 0.0
        %v871 = vmax.f32 %v743, 0.0
        %872 = vst [vmem:[%s225] sm:$0xff] %v744
        %873 = vst [vmem:[%s225 + $0x8] sm:$0xff] %v745
        %874 = vst [vmem:[%s225 + $0x10] sm:$0xff] %v746
        %875 = vst [vmem:[%s225 + $0x18] sm:$0xff] %v747
        %876 = vst [vmem:[%s225 + $0x20] sm:$0xff] %v748
        %877 = vst [vmem:[%s225 + $0x28] sm:$0xff] %v749
        %878 = vst [vmem:[%s225 + $0x30] sm:$0xff] %v750
        %879 = vst [vmem:[%s225 + $0x38] sm:$0xff] %v751
        %880 = vst [vmem:[%s225 + $0x40] sm:$0xff] %v752
        %881 = vst [vmem:[%s225 + $0x48] sm:$0xff] %v753
        %882 = vst [vmem:[%s225 + $0x50] sm:$0xff] %v754
        %883 = vst [vmem:[%s225 + $0x58] sm:$0xff] %v755
        %884 = vst [vmem:[%s225 + $0x60] sm:$0xff] %v756
        %885 = vst [vmem:[%s225 + $0x68] sm:$0xff] %v757
        %886 = vst [vmem:[%s225 + $0x70] sm:$0xff] %v758
        %887 = vst [vmem:[%s225 + $0x78] sm:$0xff] %v759
        %888 = vst [vmem:[%s225 + $0x80] sm:$0xff] %v760
        %889 = vst [vmem:[%s225 + $0x88] sm:$0xff] %v761
        %890 = vst [vmem:[%s225 + $0x90] sm:$0xff] %v762
        %891 = vst [vmem:[%s225 + $0x98] sm:$0xff] %v763
        %892 = vst [vmem:[%s225 + $0xa0] sm:$0xff] %v764
        %893 = vst [vmem:[%s225 + $0xa8] sm:$0xff] %v765
        %894 = vst [vmem:[%s225 + $0xb0] sm:$0xff] %v766
        %895 = vst [vmem:[%s225 + $0xb8] sm:$0xff] %v767
        %896 = vst [vmem:[%s225 + $0xc0] sm:$0xff] %v768
        %897 = vst [vmem:[%s225 + $0xc8] sm:$0xff] %v769
        %898 = vst [vmem:[%s225 + $0xd0] sm:$0xff] %v770
        %899 = vst [vmem:[%s225 + $0xd8] sm:$0xff] %v771
        %900 = vst [vmem:[%s225 + $0xe0] sm:$0xff] %v772
        %901 = vst [vmem:[%s225 + $0xe8] sm:$0xff] %v773
        %902 = vst [vmem:[%s225 + $0xf0] sm:$0xff] %v774
        %903 = vst [vmem:[%s225 + $0xf8] sm:$0xff] %v775
        %904 = vst [vmem:[%s225 + $0x100] sm:$0xff] %v776
        %905 = vst [vmem:[%s225 + $0x108] sm:$0xff] %v777
        %906 = vst [vmem:[%s225 + $0x110] sm:$0xff] %v778
        %907 = vst [vmem:[%s225 + $0x118] sm:$0xff] %v779
        %908 = vst [vmem:[%s225 + $0x120] sm:$0xff] %v780
        %909 = vst [vmem:[%s225 + $0x128] sm:$0xff] %v781
        %910 = vst [vmem:[%s225 + $0x130] sm:$0xff] %v782
        %911 = vst [vmem:[%s225 + $0x138] sm:$0xff] %v783
        %912 = vst [vmem:[%s225 + $0x140] sm:$0xff] %v784
        %913 = vst [vmem:[%s225 + $0x148] sm:$0xff] %v785
        %914 = vst [vmem:[%s225 + $0x150] sm:$0xff] %v786
        %915 = vst [vmem:[%s225 + $0x158] sm:$0xff] %v787
        %916 = vst [vmem:[%s225 + $0x160] sm:$0xff] %v788
        %917 = vst [vmem:[%s225 + $0x168] sm:$0xff] %v789
        %918 = vst [vmem:[%s225 + $0x170] sm:$0xff] %v790
        %919 = vst [vmem:[%s225 + $0x178] sm:$0xff] %v791
        %920 = vst [vmem:[%s225 + $0x180] sm:$0xff] %v792
        %921 = vst [vmem:[%s225 + $0x188] sm:$0xff] %v793
        %922 = vst [vmem:[%s225 + $0x190] sm:$0xff] %v794
        %923 = vst [vmem:[%s225 + $0x198] sm:$0xff] %v795
        %924 = vst [vmem:[%s225 + $0x1a0] sm:$0xff] %v796
        %925 = vst [vmem:[%s225 + $0x1a8] sm:$0xff] %v797
        %926 = vst [vmem:[%s225 + $0x1b0] sm:$0xff] %v798
        %927 = vst [vmem:[%s225 + $0x1b8] sm:$0xff] %v799
        %928 = vst [vmem:[%s225 + $0x1c0] sm:$0xff] %v800
        %929 = vst [vmem:[%s225 + $0x1c8] sm:$0xff] %v801
        %930 = vst [vmem:[%s225 + $0x1d0] sm:$0xff] %v802
        %931 = vst [vmem:[%s225 + $0x1d8] sm:$0xff] %v803
        %932 = vst [vmem:[%s225 + $0x1e0] sm:$0xff] %v804
        %933 = vst [vmem:[%s225 + $0x1e8] sm:$0xff] %v805
        %934 = vst [vmem:[%s225 + $0x1f0] sm:$0xff] %v806
        %935 = vst [vmem:[%s225 + $0x1f8] sm:$0xff] %v807
        %936 = vst [vmem:[%s225 + $0x200] sm:$0xff] %v808
        %937 = vst [vmem:[%s225 + $0x208] sm:$0xff] %v809
        %938 = vst [vmem:[%s225 + $0x210] sm:$0xff] %v810
        %939 = vst [vmem:[%s225 + $0x218] sm:$0xff] %v811
        %940 = vst [vmem:[%s225 + $0x220] sm:$0xff] %v812
        %941 = vst [vmem:[%s225 + $0x228] sm:$0xff] %v813
        %942 = vst [vmem:[%s225 + $0x230] sm:$0xff] %v814
        %943 = vst [vmem:[%s225 + $0x238] sm:$0xff] %v815
        %944 = vst [vmem:[%s225 + $0x240] sm:$0xff] %v816
        %945 = vst [vmem:[%s225 + $0x248] sm:$0xff] %v817
        %946 = vst [vmem:[%s225 + $0x250] sm:$0xff] %v818
        %947 = vst [vmem:[%s225 + $0x258] sm:$0xff] %v819
        %948 = vst [vmem:[%s225 + $0x260] sm:$0xff] %v820
        %949 = vst [vmem:[%s225 + $0x268] sm:$0xff] %v821
        %950 = vst [vmem:[%s225 + $0x270] sm:$0xff] %v822
        %951 = vst [vmem:[%s225 + $0x278] sm:$0xff] %v823
        %952 = vst [vmem:[%s225 + $0x280] sm:$0xff] %v824
        %953 = vst [vmem:[%s225 + $0x288] sm:$0xff] %v825
        %954 = vst [vmem:[%s225 + $0x290] sm:$0xff] %v826
        %955 = vst [vmem:[%s225 + $0x298] sm:$0xff] %v827
        %956 = vst [vmem:[%s225 + $0x2a0] sm:$0xff] %v828
        %957 = vst [vmem:[%s225 + $0x2a8] sm:$0xff] %v829
        %958 = vst [vmem:[%s225 + $0x2b0] sm:$0xff] %v830
        %959 = vst [vmem:[%s225 + $0x2b8] sm:$0xff] %v831
        %960 = vst [vmem:[%s225 + $0x2c0] sm:$0xff] %v832
        %961 = vst [vmem:[%s225 + $0x2c8] sm:$0xff] %v833
        %962 = vst [vmem:[%s225 + $0x2d0] sm:$0xff] %v834
        %963 = vst [vmem:[%s225 + $0x2d8] sm:$0xff] %v835
        %964 = vst [vmem:[%s225 + $0x2e0] sm:$0xff] %v836
        %965 = vst [vmem:[%s225 + $0x2e8] sm:$0xff] %v837
        %966 = vst [vmem:[%s225 + $0x2f0] sm:$0xff] %v838
        %967 = vst [vmem:[%s225 + $0x2f8] sm:$0xff] %v839
        %968 = vst [vmem:[%s225 + $0x300] sm:$0xff] %v840
        %969 = vst [vmem:[%s225 + $0x308] sm:$0xff] %v841
        %970 = vst [vmem:[%s225 + $0x310] sm:$0xff] %v842
        %971 = vst [vmem:[%s225 + $0x318] sm:$0xff] %v843
        %972 = vst [vmem:[%s225 + $0x320] sm:$0xff] %v844
        %973 = vst [vmem:[%s225 + $0x328] sm:$0xff] %v845
        %974 = vst [vmem:[%s225 + $0x330] sm:$0xff] %v846
        %975 = vst [vmem:[%s225 + $0x338] sm:$0xff] %v847
        %976 = vst [vmem:[%s225 + $0x340] sm:$0xff] %v848
        %977 = vst [vmem:[%s225 + $0x348] sm:$0xff] %v849
        %978 = vst [vmem:[%s225 + $0x350] sm:$0xff] %v850
        %979 = vst [vmem:[%s225 + $0x358] sm:$0xff] %v851
        %980 = vst [vmem:[%s225 + $0x360] sm:$0xff] %v852
        %981 = vst [vmem:[%s225 + $0x368] sm:$0xff] %v853
        %982 = vst [vmem:[%s225 + $0x370] sm:$0xff] %v854
        %983 = vst [vmem:[%s225 + $0x378] sm:$0xff] %v855
        %984 = vst [vmem:[%s225 + $0x380] sm:$0xff] %v856
        %985 = vst [vmem:[%s225 + $0x388] sm:$0xff] %v857
        %986 = vst [vmem:[%s225 + $0x390] sm:$0xff] %v858
        %987 = vst [vmem:[%s225 + $0x398] sm:$0xff] %v859
        %988 = vst [vmem:[%s225 + $0x3a0] sm:$0xff] %v860
        %989 = vst [vmem:[%s225 + $0x3a8] sm:$0xff] %v861
        %990 = vst [vmem:[%s225 + $0x3b0] sm:$0xff] %v862
        %991 = vst [vmem:[%s225 + $0x3b8] sm:$0xff] %v863
        %992 = vst [vmem:[%s225 + $0x3c0] sm:$0xff] %v864
        %993 = vst [vmem:[%s225 + $0x3c8] sm:$0xff] %v865
        %994 = vst [vmem:[%s225 + $0x3d0] sm:$0xff] %v866
        %995 = vst [vmem:[%s225 + $0x3d8] sm:$0xff] %v867
        %996 = vst [vmem:[%s225 + $0x3e0] sm:$0xff] %v868
        %997 = vst [vmem:[%s225 + $0x3e8] sm:$0xff] %v869
        %998 = vst [vmem:[%s225 + $0x3f0] sm:$0xff] %v870
        %999 = vst [vmem:[%s225 + $0x3f8] sm:$0xff] %v871
        %s1000 = sand.u32 %s100, 1
        %s1001 = scalar_lea.sflag [#allocation4], %s1000
        %s1002 = sand.u32 %s100, 1
        %s1003 = smul.addr %s1002, 1024
        %s1004 = scalar_lea.vmem [#allocation7], %s1003
        // Predicated region
        $region37: #{tpu_custom_call.1} parent=27 // pred_check
          %p1005 = pneg %p110
        $region38: #{tpu_custom_call.1} parent=27 // pred_check_branch
          %1007 = sbr.rel (%p1005) target = $region40
        $region39: #{tpu_custom_call.1} parent=27 // pred_region
          %s1008 = smul.u32 8, %s26
          %s1009 = smul.u32 16, %s27
          %s1011 = ssub.s32 16384, 16384
          %1012 = vsyncadd %s1001, %s1011
          %s1013 = smul.addr %s1008, 16
          %s1014 = sadd.s32 %s1009, %s1013
          %s1015 = smul.addr %s1014, 128
          %s1016 = scalar_lea.hbm %s2, %s1015
          %s1017 = sshll.u32 %s1004, 4
          %s1018 = int_to_ptr.vmem [resolvable:$true] %s1017
          %1023 = dma.vmem_to_hbm [thread:$0]  %s1018, 16384, %s1016, %s1001, 2048, 2048, 128
        $region40: #{tpu_custom_call.1} parent=27 // pred_fallthru
          _
      $region28: #{tpu_custom_call.1} parent=5 // pred_fallthru
        _
      %p1024 = scmp.le.s32.totalorder 2, %s17
      // Predicated region
      $region41: #{tpu_custom_call.1} parent=5 // pred_check
        %p1025 = pneg %p1024
      $region42: #{tpu_custom_call.1} parent=5 // pred_check_branch
        %1027 = sbr.rel (%p1025) target = $region44
      $region43: #{tpu_custom_call.1} parent=5 // pred_region
        %s1028 = ssub.s32 %s17, 2
        // Predicated region
        $region45: #{tpu_custom_call.1} parent=43 // pred_check
          %p1029 = pneg %p116
        $region46: #{tpu_custom_call.1} parent=43 // pred_check_branch
          %1031 = sbr.rel (%p1029) target = $region48
        $region47: #{tpu_custom_call.1} parent=43 // pred_region
          %s1032 = sand.u32 %s101, 1
          %s1033 = scalar_lea.sflag [#allocation4], %s1032
          %s1034 = sand.u32 %s101, 1
          %s1035 = smul.addr %s1034, 1024
          %s1036 = scalar_lea.vmem [#allocation7], %s1035
          %1037 = dma.done %s1033, 16384
        $region48: #{tpu_custom_call.1} parent=43 // pred_fallthru
          _
      $region44: #{tpu_custom_call.1} parent=5 // pred_fallthru
        _
    $region6: #{tpu_custom_call.1} parent=1 // loop_footer
      %s21 = sadd.s32 1, %s17
    $region7: #{tpu_custom_call.1} parent=1 // loop_footer_branch
      %16 = sbr.rel target = $region3
    $region8: #{tpu_custom_call.1} parent=1 // loop_exit
      _
    %1038 = vsyncpa [#allocation3], 1
    %s1039 = scalar_lea.sflag [#allocation3], 1
    %1040 = vsyncpa %s1039, 1
    %1041 = vsyncpa [#allocation6], 1
    %s1042 = scalar_lea.sflag [#allocation6], 1
    %1043 = vsyncpa %s1042, 1
    %1044 = vsyncpa [#allocation4], 1
    %s1045 = scalar_lea.sflag [#allocation4], 1
    %1046 = vsyncpa %s1045, 1

</llo_original>
